<compile_context>
chip_gen: v5e
topology: v5e:2x2
jax: 0.10.0
libtpu: 0.0.40
codegen_flags: <defaults>
</compile_context>

<pallas_src>
import math

import jax
import jax.numpy as jnp
from jax.experimental import pallas as pl
from jax.experimental.pallas import tpu as pltpu  # noqa: F401  (TPU backend)


# ------------------------------- kernel --------------------------------------
def _pos_emb_kernel(inv_ts_ref, o_ref):
    """inv_ts_ref: (1, D) inv_timescales tiled twice along lanes.  o_ref: (S, D)."""
    S, D = o_ref.shape
    nt = D // 2  # num_timescales (static)

    # position index along rows, lane index along columns
    pos = jax.lax.broadcasted_iota(jnp.int32, (S, D), 0).astype(jnp.float32)
    lane = jax.lax.broadcasted_iota(jnp.int32, (S, D), 1)

    scaled = pos * inv_ts_ref[...]                       # (1, D) broadcasts to (S, D)
    o_ref[...] = jnp.where(lane < nt, jnp.sin(scaled), jnp.cos(scaled))


# ------------------------------- wrapper --------------------------------------
def add_positional_embedding(seq_length, *, min_timescale=1, max_timescale=10000,
                             embedding_dim=128):
    """Matches AddPositionalEmbedding.forward(seq_length) -> (1, seq_length, embedding_dim)."""
    num_timescales = embedding_dim // 2
    log_timescale_increment = (
        math.log(float(max_timescale) / float(min_timescale)) / (num_timescales - 1))
    inv_timescales = (float(min_timescale) *
                      jnp.exp(jnp.arange(num_timescales, dtype=jnp.float32) *
                              -log_timescale_increment))                  # (nt,)

    d_even = 2 * num_timescales
    # Tile so lane d holds its own timescale (first half = sin lanes, second = cos lanes).
    inv_tiled = jnp.concatenate([inv_timescales, inv_timescales]).reshape(1, d_even)

    out = pl.pallas_call(
        _pos_emb_kernel,
        out_shape=jax.ShapeDtypeStruct((seq_length, d_even), jnp.float32),
        grid=(1,),
        in_specs=[pl.BlockSpec((1, d_even), lambda i: (0, 0))],
        out_specs=pl.BlockSpec((seq_length, d_even), lambda i: (0, 0)),
        compiler_params=pltpu.CompilerParams(dimension_semantics=("arbitrary",)),
    )(inv_tiled)

    if embedding_dim % 2:
        # Trailing zero column for odd embedding_dim, appended in the wrapper.
        out = jnp.concatenate(
            [out, jnp.zeros((seq_length, 1), jnp.float32)], axis=1)

    return out[None]   # (1, seq_length, embedding_dim)


# --------------------------- pure-JAX reference --------------------------------
def ref_add_positional_embedding(seq_length, *, min_timescale=1, max_timescale=10000,
                                 embedding_dim=128):
    num_timescales = embedding_dim // 2
    log_timescale_increment = (
        math.log(float(max_timescale) / float(min_timescale)) / (num_timescales - 1))
    inv_timescales = (float(min_timescale) *
                      jnp.exp(jnp.arange(num_timescales, dtype=jnp.float32) *
                              -log_timescale_increment))
    position = jnp.arange(seq_length, dtype=jnp.float32)
    scaled_time = position[None, :, None] * inv_timescales[None, None, :]
    signal = jnp.concatenate([jnp.sin(scaled_time), jnp.cos(scaled_time)], axis=2)
    if embedding_dim % 2:
        signal = jnp.concatenate(
            [signal, jnp.zeros((1, seq_length, 1), jnp.float32)], axis=2)
    return signal


# --------------------------------- main ----------------------------------------
if __name__ == "__main__":
    # The module's forward takes only `seq_length`; the inv_timescales buffer is
    # deterministic, so there are no random tensor inputs (PRNGKey kept for form).
    _ = jax.random.PRNGKey(0)

    configs = [
        dict(seq_length=16, embedding_dim=128),   # lane-dense primary config
        dict(seq_length=16, embedding_dim=512),   # PyTorch default embedding_dim
    ]

    for cfg in configs:
        out = jax.block_until_ready(add_positional_embedding(**cfg))
        ref = jax.block_until_ready(ref_add_positional_embedding(**cfg))

        assert out.shape == (1, cfg["seq_length"], cfg["embedding_dim"]), out.shape
        max_err = float(jnp.max(jnp.abs(out - ref)))
        assert max_err < 1e-5, f"mismatch vs reference ({cfg}): max abs err {max_err}"

    print("KERNEL_OK")
</pallas_src>

<mosaic_0001>
module attributes {stable_mosaic.version = 11 : i64} {
  func.func @_pos_emb_kernel(%arg0: i32, %arg1: memref<1x128xf32, #tpu.memory_space<vmem>>, %arg2: memref<16x128xf32, #tpu.memory_space<vmem>>) attributes {dimension_semantics = [#tpu.dimension_semantics<arbitrary>], iteration_bounds = array<i64: 1>, scalar_prefetch = 0 : i64, scratch_operands = 0 : i64, tpu.core_type = #tpu.core_type<tc>, window_params = [{pipeline_mode = #tpu.pipeline_mode<synchronous>, transform_indices = @transform_0, window_bounds = array<i64: 1, 128>}, {pipeline_mode = #tpu.pipeline_mode<synchronous>, transform_indices = @transform_1, window_bounds = array<i64: 16, 128>}]} {
    %0 = tpu.iota {dimensions = array<i32: 0>} : vector<16x128xi32>
    %1 = arith.sitofp %0 : vector<16x128xi32> to vector<16x128xf32>
    %2 = tpu.iota {dimensions = array<i32: 1>} : vector<16x128xi32>
    %c0 = arith.constant 0 : index
    %c0_0 = arith.constant 0 : index
    %3 = vector.load %arg1[%c0, %c0_0] : memref<1x128xf32, #tpu.memory_space<vmem>>, vector<1x128xf32>
    %4 = vector.broadcast %3 : vector<1x128xf32> to vector<16x128xf32>
    %5 = arith.mulf %1, %4 : vector<16x128xf32>
    %c64_i32 = arith.constant 64 : i32
    %6 = vector.broadcast %c64_i32 : i32 to vector<16x128xi32>
    %7 = arith.cmpi slt, %2, %6 : vector<16x128xi32>
    %8 = math.sin %5 : vector<16x128xf32>
    %9 = math.cos %5 : vector<16x128xf32>
    %10 = arith.select %7, %8, %9 : vector<16x128xi1>, vector<16x128xf32>
    %c0_1 = arith.constant 0 : index
    %c0_2 = arith.constant 0 : index
    %11 = vector.load %arg2[%c0_1, %c0_2] : memref<16x128xf32, #tpu.memory_space<vmem>>, vector<16x128xf32>
    tpu.vector_store %arg2[%c0_1, %c0_2], %10 {strides = array<i32>} : memref<16x128xf32, #tpu.memory_space<vmem>>, vector<16x128xf32>,
    return
  }
  func.func @transform_0(%arg0: i32) -> (i32, i32) {
    %c0_i32 = arith.constant 0 : i32
    %c0_i32_0 = arith.constant 0 : i32
    %c0_i32_1 = arith.constant 0 : i32
    return %c0_i32, %c0_i32_0 : i32, i32
  }
  func.func @transform_1(%arg0: i32) -> (i32, i32) {
    %c0_i32 = arith.constant 0 : i32
    %c0_i32_0 = arith.constant 0 : i32
    %c0_i32_1 = arith.constant 0 : i32
    return %c0_i32, %c0_i32_0 : i32, i32
  }
}

</mosaic_0001>

<llo_original>
// kernel: tpu_custom_call.1
$region0: #{tpu_custom_call.1}
  #allocation0 [shape = 'u32[]', space=smem, size = 0x4, offset = 0x4, fixed_abs, tag = 'smem constant byte address 0x4 - core index']
  #allocation1 [shape = 'u32[72,128]{1,0:T(1,128)}', space=vmem, size = 0x9000, scoped, tag = 'internal scratch']
  %s0 = inlined_call_operand.hbm [shape: f32[1,128], index: 0, kind: input, shape index: {}]
  %s1 = inlined_call_operand.hbm [shape: f32[16,128], index: 1, kind: output, shape index: {}]
  %s2 = sld [smem:[#allocation0]]
  $region18: #{tpu_custom_call.1} parent=0
    _
  %s4 = ssub.s32 1, %s2
  %s5 = scalar_select 0, %s4, %s2
  $region1: #{tpu_custom_call.1} parent=0
    #allocation2 [shape = 'u8[512]{0}', space=vmem, size = 0x400, scoped, tag = 'input window, operand 0, single buffered']
    #allocation3 [shape = 's32[1]{0}', space=sflag, size = 0x4, scoped, tag = 'scoped memory for tpu_custom_call.1']
    #allocation4 [shape = 's32[1]{0}', space=sflag, size = 0x4, scoped, tag = 'scoped memory for tpu_custom_call.1']
    #allocation5 [shape = 'u8[8192]{0}', space=vmem, size = 0x2000, scoped, tag = 'output window, operand 0, single buffered']
    %6 = vsyncpa [#allocation3], 0
    %7 = vsyncpa [#allocation4], 0
    // Predicated region
    $region2: #{tpu_custom_call.1} parent=1 // pred_check
      _
    $region3: #{tpu_custom_call.1} parent=1 // pred_check_branch
      %9 = sbr.rel (0) target = $region5
    $region4: #{tpu_custom_call.1} parent=1 // pred_region
      %11 = vsyncadd [#allocation3], 0
      %s13 = sshll.u32 %s0, 4
      %s14 = int_to_ptr.hbm [resolvable:$true] %s13
      %s15 = sshll.u32 [#allocation2], 4
      %s16 = int_to_ptr.vmem [resolvable:$true] %s15
      %18 = dma.hbm_to_vmem [thread:$0]  %s14, 16, %s16, [#allocation3]
    $region5: #{tpu_custom_call.1} parent=1 // pred_fallthru
      _
    // Predicated region
    $region6: #{tpu_custom_call.1} parent=1 // pred_check
      _
    $region7: #{tpu_custom_call.1} parent=1 // pred_check_branch
      %20 = sbr.rel (0) target = $region9
    $region8: #{tpu_custom_call.1} parent=1 // pred_region
      %22 = dma.done [#allocation3], 16
    $region9: #{tpu_custom_call.1} parent=1 // pred_fallthru
      _
    %v23 = vlaneseq
    %v24 = vshrl.u32 %v23, 7
    %v25 = vadd.s32 %v24, 8
    %v26 = vcvt.s32.f32 %v24
    %v27 = vcvt.s32.f32 %v25
    %v28 = vlaneseq
    %v29 = vand.u32 %v28, 127
    %v30 = vld [vmem:[#allocation2] sm:$0x1]
    %v32 = vperm.slane %v30, 0
    %v34 = vmul.f32 %v26, %v32
    %v35 = vmul.f32 %v27, %v32
    %vm36 = vcmp.lt.s32.totalorder %v29, 64
    %v37 = vand.u32 2147483647, %v34
    %vm38 = vcmp.le.f32.partialorder %v37, 0.7853982
    %vm39 = vcmp.lt.s32.totalorder %v34, 0
    %v40 = vand.u32 %v34, 2139095040
    %v41 = vshrl.u32 %v40, 23
    %v42 = vsub.s32 %v41, 127
    %v43 = vand.u32 2147483647, %v34
    %v44 = vand.u32 %v43, 8388607
    %v45 = vor.u32 %v44, 8388608
    %v46 = vsub.s32 0, %v45
    %v47 = vadd.s32 %v42, 1
    %vm48 = vcmp.gt.s32.totalorder %v47, 0
    %v49 = vsel %vm48, %v47, 0
    %v50 = vshrl.u32 %v49, 5
    %v51 = vand.u32 %v49, 31
    %v52 = vsub.s32 32, %v51
    %v53 = vshrl.u32 683565275, %v52
    %v54 = vshll.u32 683565275, %v51
    %v55 = vshrl.u32 2475754826, %v52
    %v56 = vor.u32 %v54, %v55
    %v57 = vshll.u32 2475754826, %v51
    %v58 = vshrl.u32 2131351028, %v52
    %v59 = vor.u32 %v57, %v58
    %v60 = vshll.u32 2131351028, %v51
    %v61 = vshrl.u32 2102212464, %v52
    %v62 = vor.u32 %v60, %v61
    %v63 = vshll.u32 2102212464, %v51
    %v64 = vshrl.u32 920167782, %v52
    %v65 = vor.u32 %v63, %v64
    %v66 = vshll.u32 920167782, %v51
    %v67 = vshrl.u32 1326507024, %v52
    %v68 = vor.u32 %v66, %v67
    %vm69 = vcmp.lt.s32.totalorder %v50, 1
    %vm70 = vcmp.lt.s32.totalorder %v50, 2
    %vm71 = vcmp.lt.s32.totalorder %v50, 3
    %vm72 = vcmp.lt.s32.totalorder %v50, 4
    %v73 = vsel %vm69, %v53, %v56
    %v74 = vsel %vm72, %v62, 2102212464
    %v75 = vsel %vm71, %v59, %v74
    %v76 = vsel %vm70, %v73, %v75
    %v77 = vsel %vm69, %v56, %v59
    %v78 = vsel %vm72, %v65, 920167782
    %v79 = vsel %vm71, %v62, %v78
    %v80 = vsel %vm70, %v77, %v79
    %v81 = vsel %vm69, %v59, %v62
    %v82 = vsel %vm72, %v68, 1326507024
    %v83 = vsel %vm71, %v65, %v82
    %v84 = vsel %vm70, %v81, %v83
    %v85 = vshll.u32 %v45, 8
    %v86 = vand.u32 %v85, 65535
    %v87 = vshrl.u32 %v85, 16
    %v88 = vand.u32 %v84, 65535
    %v89 = vshrl.u32 %v84, 16
    %v90 = vmul.u32 %v86, %v88
    %v91 = vmul.u32 %v86, %v89
    %v92 = vmul.u32 %v87, %v88
    %v93 = vmul.u32 %v87, %v89
    %v94 = vshll.u32 %v91, 16
    %v95 = vshrl.u32 %v91, 16
    %v96 = vshll.u32 %v92, 16
    %v97 = vshrl.u32 %v92, 16
    %vm98 = vc.u32 %v90, %v94
    %v99 = vsel %vm98, 1, 0
    %v100 = vadd.s32 %v90, %v94
    %v101 = vadd.s32 %v93, %v99
    %vm102 = vc.u32 %v100, %v96
    %v103 = vsel %vm102, 1, 0
    %v104 = vadd.s32 %v100, %v96
    %v105 = vadd.s32 %v101, %v103
    %v106 = vadd.s32 %v105, %v95
    %v107 = vadd.s32 %v106, %v97
    %v108 = vand.u32 %v85, 65535
    %v109 = vshrl.u32 %v85, 16
    %v110 = vand.u32 %v80, 65535
    %v111 = vshrl.u32 %v80, 16
    %v112 = vmul.u32 %v108, %v110
    %v113 = vmul.u32 %v108, %v111
    %v114 = vmul.u32 %v109, %v110
    %v115 = vmul.u32 %v109, %v111
    %v116 = vshll.u32 %v113, 16
    %v117 = vshrl.u32 %v113, 16
    %v118 = vshll.u32 %v114, 16
    %v119 = vshrl.u32 %v114, 16
    %vm120 = vc.u32 %v112, %v116
    %v121 = vsel %vm120, 1, 0
    %v122 = vadd.s32 %v112, %v116
    %v123 = vadd.s32 %v115, %v121
    %vm124 = vc.u32 %v122, %v118
    %v125 = vsel %vm124, 1, 0
    %v126 = vadd.s32 %v122, %v118
    %v127 = vadd.s32 %v123, %v125
    %v128 = vadd.s32 %v127, %v117
    %v129 = vadd.s32 %v128, %v119
    %v130 = vmul.u32 %v85, %v76
    %v131 = vadd.s32 %v107, %v126
    %vm132 = vc.u32 %v107, %v126
    %v133 = vadd.s32 %v129, 1
    %v134 = vsel %vm132, %v133, %v129
    %v135 = vadd.s32 %v130, %v134
    %v136 = vadd.s32 %v135, 536870912
    %v137 = vshrl.u32 %v136, 30
    %v138 = vshll.u32 %v137, 30
    %v139 = vsub.s32 %v135, %v138
    %vm140 = vcmp.lt.s32.totalorder %v139, 0
    %v141 = vsub.s32 0, %v139
    %v142 = vsel %vm140, %v141, %v139
    %v143 = vclz %v142
    %v144 = vsub.s32 %v143, 2
    %vm145 = vcmp.gt.s32.totalorder 0, %v144
    %v146 = vsel %vm145, 0, %v144
    %v147 = vsub.s32 32, %v146
    %v148 = vshll.u32 %v139, %v146
    %v149 = vshrl.u32 %v131, %v147
    %v150 = vor.u32 %v148, %v149
    %v151 = vsub.s32 4294967266, %v146
    %v152 = vadd.s32 %v151, 127
    %v153 = vshll.u32 %v152, 23
    %v154 = vor.u32 4788187, %v153
    %v155 = vand.u32 2147483647, %v154
    %v157 = vcvt.s32.f32 %v150
    %v158 = vmul.f32 %v157, %v155
    %v159 = vxor.u32 %v158, 2147483648
    %v160 = vsel %vm39, %v159, %v158
    %v161 = vsub.s32 4, %v137
    %v162 = vsel %vm39, %v161, %v137
    %v163 = vsel %vm38, %v34, %v160
    %v164 = vsel %vm38, 0, %v162
    %v165 = vmul.f32 %v163, %v163
    %v166 = vmul.f32 %v165, -0.001358992
    %v167 = vadd.f32 %v166, 0.041655596
    %v168 = vmul.f32 %v165, %v167
    %v169 = vadd.f32 %v168, -0.4999988
    %v170 = vmul.f32 %v165, %v169
    %v171 = vadd.f32 1.0, %v170
    %v172 = vmul.f32 %v163, %v163
    %v173 = vmul.f32 %v172, -0.00019511016
    %v174 = vadd.f32 %v173, 0.008332121
    %v175 = vmul.f32 %v172, %v174
    %v176 = vadd.f32 %v175, -0.16666654
    %v177 = vmul.f32 %v172, %v176
    %v178 = vadd.f32 %v177, 1.0
    %v179 = vmul.f32 %v178, %v163
    %vm180 = vweird.f32 %v34
    %v181 = vadd.s32 %v164, 3
    %v182 = vand.u32 %v181, 3
    %vm183 = vcmp.lt.s32.totalorder %v182, 2
    %vm184 = vcmp.eq.s32.totalorder %v182, 0
    %v185 = vxor.u32 %v179, 2147483648
    %v186 = vsel %vm184, %v171, %v185
    %vm187 = vcmp.eq.s32.totalorder %v182, 2
    %v188 = vxor.u32 %v171, 2147483648
    %v189 = vsel %vm187, %v188, %v179
    %v190 = vsel %vm183, %v186, %v189
    %v191 = vsel %vm180, nan, %v190
    %v192 = vand.u32 2147483647, %v35
    %vm193 = vcmp.le.f32.partialorder %v192, 0.7853982
    %vm194 = vcmp.lt.s32.totalorder %v35, 0
    %v195 = vand.u32 %v35, 2139095040
    %v196 = vshrl.u32 %v195, 23
    %v197 = vsub.s32 %v196, 127
    %v198 = vand.u32 2147483647, %v35
    %v199 = vand.u32 %v198, 8388607
    %v200 = vor.u32 %v199, 8388608
    %v201 = vsub.s32 0, %v200
    %v202 = vadd.s32 %v197, 1
    %vm203 = vcmp.gt.s32.totalorder %v202, 0
    %v204 = vsel %vm203, %v202, 0
    %v205 = vshrl.u32 %v204, 5
    %v206 = vand.u32 %v204, 31
    %v207 = vsub.s32 32, %v206
    %v208 = vshrl.u32 683565275, %v207
    %v209 = vshll.u32 683565275, %v206
    %v210 = vshrl.u32 2475754826, %v207
    %v211 = vor.u32 %v209, %v210
    %v212 = vshll.u32 2475754826, %v206
    %v213 = vshrl.u32 2131351028, %v207
    %v214 = vor.u32 %v212, %v213
    %v215 = vshll.u32 2131351028, %v206
    %v216 = vshrl.u32 2102212464, %v207
    %v217 = vor.u32 %v215, %v216
    %v218 = vshll.u32 2102212464, %v206
    %v219 = vshrl.u32 920167782, %v207
    %v220 = vor.u32 %v218, %v219
    %v221 = vshll.u32 920167782, %v206
    %v222 = vshrl.u32 1326507024, %v207
    %v223 = vor.u32 %v221, %v222
    %vm224 = vcmp.lt.s32.totalorder %v205, 1
    %vm225 = vcmp.lt.s32.totalorder %v205, 2
    %vm226 = vcmp.lt.s32.totalorder %v205, 3
    %vm227 = vcmp.lt.s32.totalorder %v205, 4
    %v228 = vsel %vm224, %v208, %v211
    %v229 = vsel %vm227, %v217, 2102212464
    %v230 = vsel %vm226, %v214, %v229
    %v231 = vsel %vm225, %v228, %v230
    %v232 = vsel %vm224, %v211, %v214
    %v233 = vsel %vm227, %v220, 920167782
    %v234 = vsel %vm226, %v217, %v233
    %v235 = vsel %vm225, %v232, %v234
    %v236 = vsel %vm224, %v214, %v217
    %v237 = vsel %vm227, %v223, 1326507024
    %v238 = vsel %vm226, %v220, %v237
    %v239 = vsel %vm225, %v236, %v238
    %v240 = vshll.u32 %v200, 8
    %v241 = vand.u32 %v240, 65535
    %v242 = vshrl.u32 %v240, 16
    %v243 = vand.u32 %v239, 65535
    %v244 = vshrl.u32 %v239, 16
    %v245 = vmul.u32 %v241, %v243
    %v246 = vmul.u32 %v241, %v244
    %v247 = vmul.u32 %v242, %v243
    %v248 = vmul.u32 %v242, %v244
    %v249 = vshll.u32 %v246, 16
    %v250 = vshrl.u32 %v246, 16
    %v251 = vshll.u32 %v247, 16
    %v252 = vshrl.u32 %v247, 16
    %vm253 = vc.u32 %v245, %v249
    %v254 = vsel %vm253, 1, 0
    %v255 = vadd.s32 %v245, %v249
    %v256 = vadd.s32 %v248, %v254
    %vm257 = vc.u32 %v255, %v251
    %v258 = vsel %vm257, 1, 0
    %v259 = vadd.s32 %v255, %v251
    %v260 = vadd.s32 %v256, %v258
    %v261 = vadd.s32 %v260, %v250
    %v262 = vadd.s32 %v261, %v252
    %v263 = vand.u32 %v240, 65535
    %v264 = vshrl.u32 %v240, 16
    %v265 = vand.u32 %v235, 65535
    %v266 = vshrl.u32 %v235, 16
    %v267 = vmul.u32 %v263, %v265
    %v268 = vmul.u32 %v263, %v266
    %v269 = vmul.u32 %v264, %v265
    %v270 = vmul.u32 %v264, %v266
    %v271 = vshll.u32 %v268, 16
    %v272 = vshrl.u32 %v268, 16
    %v273 = vshll.u32 %v269, 16
    %v274 = vshrl.u32 %v269, 16
    %vm275 = vc.u32 %v267, %v271
    %v276 = vsel %vm275, 1, 0
    %v277 = vadd.s32 %v267, %v271
    %v278 = vadd.s32 %v270, %v276
    %vm279 = vc.u32 %v277, %v273
    %v280 = vsel %vm279, 1, 0
    %v281 = vadd.s32 %v277, %v273
    %v282 = vadd.s32 %v278, %v280
    %v283 = vadd.s32 %v282, %v272
    %v284 = vadd.s32 %v283, %v274
    %v285 = vmul.u32 %v240, %v231
    %v286 = vadd.s32 %v262, %v281
    %vm287 = vc.u32 %v262, %v281
    %v288 = vadd.s32 %v284, 1
    %v289 = vsel %vm287, %v288, %v284
    %v290 = vadd.s32 %v285, %v289
    %v291 = vadd.s32 %v290, 536870912
    %v292 = vshrl.u32 %v291, 30
    %v293 = vshll.u32 %v292, 30
    %v294 = vsub.s32 %v290, %v293
    %vm295 = vcmp.lt.s32.totalorder %v294, 0
    %v296 = vsub.s32 0, %v294
    %v297 = vsel %vm295, %v296, %v294
    %v298 = vclz %v297
    %v299 = vsub.s32 %v298, 2
    %vm300 = vcmp.gt.s32.totalorder 0, %v299
    %v301 = vsel %vm300, 0, %v299
    %v302 = vsub.s32 32, %v301
    %v303 = vshll.u32 %v294, %v301
    %v304 = vshrl.u32 %v286, %v302
    %v305 = vor.u32 %v303, %v304
    %v306 = vsub.s32 4294967266, %v301
    %v307 = vadd.s32 %v306, 127
    %v308 = vshll.u32 %v307, 23
    %v309 = vor.u32 4788187, %v308
    %v310 = vand.u32 2147483647, %v309
    %v312 = vcvt.s32.f32 %v305
    %v313 = vmul.f32 %v312, %v310
    %v314 = vxor.u32 %v313, 2147483648
    %v315 = vsel %vm194, %v314, %v313
    %v316 = vsub.s32 4, %v292
    %v317 = vsel %vm194, %v316, %v292
    %v318 = vsel %vm193, %v35, %v315
    %v319 = vsel %vm193, 0, %v317
    %v320 = vmul.f32 %v318, %v318
    %v321 = vmul.f32 %v320, -0.001358992
    %v322 = vadd.f32 %v321, 0.041655596
    %v323 = vmul.f32 %v320, %v322
    %v324 = vadd.f32 %v323, -0.4999988
    %v325 = vmul.f32 %v320, %v324
    %v326 = vadd.f32 1.0, %v325
    %v327 = vmul.f32 %v318, %v318
    %v328 = vmul.f32 %v327, -0.00019511016
    %v329 = vadd.f32 %v328, 0.008332121
    %v330 = vmul.f32 %v327, %v329
    %v331 = vadd.f32 %v330, -0.16666654
    %v332 = vmul.f32 %v327, %v331
    %v333 = vadd.f32 %v332, 1.0
    %v334 = vmul.f32 %v333, %v318
    %vm335 = vweird.f32 %v35
    %v336 = vadd.s32 %v319, 3
    %v337 = vand.u32 %v336, 3
    %vm338 = vcmp.lt.s32.totalorder %v337, 2
    %vm339 = vcmp.eq.s32.totalorder %v337, 0
    %v340 = vxor.u32 %v334, 2147483648
    %v341 = vsel %vm339, %v326, %v340
    %vm342 = vcmp.eq.s32.totalorder %v337, 2
    %v343 = vxor.u32 %v326, 2147483648
    %v344 = vsel %vm342, %v343, %v334
    %v345 = vsel %vm338, %v341, %v344
    %v346 = vsel %vm335, nan, %v345
    %v347 = vand.u32 2147483647, %v34
    %vm348 = vcmp.le.f32.partialorder %v347, 0.7853982
    %vm349 = vcmp.lt.s32.totalorder %v34, 0
    %v350 = vand.u32 %v34, 2139095040
    %v351 = vshrl.u32 %v350, 23
    %v352 = vsub.s32 %v351, 127
    %v353 = vand.u32 2147483647, %v34
    %v354 = vand.u32 %v353, 8388607
    %v355 = vor.u32 %v354, 8388608
    %v356 = vsub.s32 0, %v355
    %v357 = vadd.s32 %v352, 1
    %vm358 = vcmp.gt.s32.totalorder %v357, 0
    %v359 = vsel %vm358, %v357, 0
    %v360 = vshrl.u32 %v359, 5
    %v361 = vand.u32 %v359, 31
    %v362 = vsub.s32 32, %v361
    %v363 = vshrl.u32 683565275, %v362
    %v364 = vshll.u32 683565275, %v361
    %v365 = vshrl.u32 2475754826, %v362
    %v366 = vor.u32 %v364, %v365
    %v367 = vshll.u32 2475754826, %v361
    %v368 = vshrl.u32 2131351028, %v362
    %v369 = vor.u32 %v367, %v368
    %v370 = vshll.u32 2131351028, %v361
    %v371 = vshrl.u32 2102212464, %v362
    %v372 = vor.u32 %v370, %v371
    %v373 = vshll.u32 2102212464, %v361
    %v374 = vshrl.u32 920167782, %v362
    %v375 = vor.u32 %v373, %v374
    %v376 = vshll.u32 920167782, %v361
    %v377 = vshrl.u32 1326507024, %v362
    %v378 = vor.u32 %v376, %v377
    %vm379 = vcmp.lt.s32.totalorder %v360, 1
    %vm380 = vcmp.lt.s32.totalorder %v360, 2
    %vm381 = vcmp.lt.s32.totalorder %v360, 3
    %vm382 = vcmp.lt.s32.totalorder %v360, 4
    %v383 = vsel %vm379, %v363, %v366
    %v384 = vsel %vm382, %v372, 2102212464
    %v385 = vsel %vm381, %v369, %v384
    %v386 = vsel %vm380, %v383, %v385
    %v387 = vsel %vm379, %v366, %v369
    %v388 = vsel %vm382, %v375, 920167782
    %v389 = vsel %vm381, %v372, %v388
    %v390 = vsel %vm380, %v387, %v389
    %v391 = vsel %vm379, %v369, %v372
    %v392 = vsel %vm382, %v378, 1326507024
    %v393 = vsel %vm381, %v375, %v392
    %v394 = vsel %vm380, %v391, %v393
    %v395 = vshll.u32 %v355, 8
    %v396 = vand.u32 %v395, 65535
    %v397 = vshrl.u32 %v395, 16
    %v398 = vand.u32 %v394, 65535
    %v399 = vshrl.u32 %v394, 16
    %v400 = vmul.u32 %v396, %v398
    %v401 = vmul.u32 %v396, %v399
    %v402 = vmul.u32 %v397, %v398
    %v403 = vmul.u32 %v397, %v399
    %v404 = vshll.u32 %v401, 16
    %v405 = vshrl.u32 %v401, 16
    %v406 = vshll.u32 %v402, 16
    %v407 = vshrl.u32 %v402, 16
    %vm408 = vc.u32 %v400, %v404
    %v409 = vsel %vm408, 1, 0
    %v410 = vadd.s32 %v400, %v404
    %v411 = vadd.s32 %v403, %v409
    %vm412 = vc.u32 %v410, %v406
    %v413 = vsel %vm412, 1, 0
    %v414 = vadd.s32 %v410, %v406
    %v415 = vadd.s32 %v411, %v413
    %v416 = vadd.s32 %v415, %v405
    %v417 = vadd.s32 %v416, %v407
    %v418 = vand.u32 %v395, 65535
    %v419 = vshrl.u32 %v395, 16
    %v420 = vand.u32 %v390, 65535
    %v421 = vshrl.u32 %v390, 16
    %v422 = vmul.u32 %v418, %v420
    %v423 = vmul.u32 %v418, %v421
    %v424 = vmul.u32 %v419, %v420
    %v425 = vmul.u32 %v419, %v421
    %v426 = vshll.u32 %v423, 16
    %v427 = vshrl.u32 %v423, 16
    %v428 = vshll.u32 %v424, 16
    %v429 = vshrl.u32 %v424, 16
    %vm430 = vc.u32 %v422, %v426
    %v431 = vsel %vm430, 1, 0
    %v432 = vadd.s32 %v422, %v426
    %v433 = vadd.s32 %v425, %v431
    %vm434 = vc.u32 %v432, %v428
    %v435 = vsel %vm434, 1, 0
    %v436 = vadd.s32 %v432, %v428
    %v437 = vadd.s32 %v433, %v435
    %v438 = vadd.s32 %v437, %v427
    %v439 = vadd.s32 %v438, %v429
    %v440 = vmul.u32 %v395, %v386
    %v441 = vadd.s32 %v417, %v436
    %vm442 = vc.u32 %v417, %v436
    %v443 = vadd.s32 %v439, 1
    %v444 = vsel %vm442, %v443, %v439
    %v445 = vadd.s32 %v440, %v444
    %v446 = vadd.s32 %v445, 536870912
    %v447 = vshrl.u32 %v446, 30
    %v448 = vshll.u32 %v447, 30
    %v449 = vsub.s32 %v445, %v448
    %vm450 = vcmp.lt.s32.totalorder %v449, 0
    %v451 = vsub.s32 0, %v449
    %v452 = vsel %vm450, %v451, %v449
    %v453 = vclz %v452
    %v454 = vsub.s32 %v453, 2
    %vm455 = vcmp.gt.s32.totalorder 0, %v454
    %v456 = vsel %vm455, 0, %v454
    %v457 = vsub.s32 32, %v456
    %v458 = vshll.u32 %v449, %v456
    %v459 = vshrl.u32 %v441, %v457
    %v460 = vor.u32 %v458, %v459
    %v461 = vsub.s32 4294967266, %v456
    %v462 = vadd.s32 %v461, 127
    %v463 = vshll.u32 %v462, 23
    %v464 = vor.u32 4788187, %v463
    %v465 = vand.u32 2147483647, %v464
    %v467 = vcvt.s32.f32 %v460
    %v468 = vmul.f32 %v467, %v465
    %v469 = vxor.u32 %v468, 2147483648
    %v470 = vsel %vm349, %v469, %v468
    %v471 = vsub.s32 4, %v447
    %v472 = vsel %vm349, %v471, %v447
    %v473 = vsel %vm348, %v34, %v470
    %v474 = vsel %vm348, 0, %v472
    %v475 = vmul.f32 %v473, %v473
    %v476 = vmul.f32 %v475, -0.001358992
    %v477 = vadd.f32 %v476, 0.041655596
    %v478 = vmul.f32 %v475, %v477
    %v479 = vadd.f32 %v478, -0.4999988
    %v480 = vmul.f32 %v475, %v479
    %v481 = vadd.f32 1.0, %v480
    %v482 = vmul.f32 %v473, %v473
    %v483 = vmul.f32 %v482, -0.00019511016
    %v484 = vadd.f32 %v483, 0.008332121
    %v485 = vmul.f32 %v482, %v484
    %v486 = vadd.f32 %v485, -0.16666654
    %v487 = vmul.f32 %v482, %v486
    %v488 = vadd.f32 %v487, 1.0
    %v489 = vmul.f32 %v488, %v473
    %vm490 = vweird.f32 %v34
    %v491 = vand.u32 %v474, 3
    %vm492 = vcmp.lt.s32.totalorder %v491, 2
    %vm493 = vcmp.eq.s32.totalorder %v491, 0
    %v494 = vxor.u32 %v489, 2147483648
    %v495 = vsel %vm493, %v481, %v494
    %vm496 = vcmp.eq.s32.totalorder %v491, 2
    %v497 = vxor.u32 %v481, 2147483648
    %v498 = vsel %vm496, %v497, %v489
    %v499 = vsel %vm492, %v495, %v498
    %v500 = vsel %vm490, nan, %v499
    %v501 = vand.u32 2147483647, %v35
    %vm502 = vcmp.le.f32.partialorder %v501, 0.7853982
    %vm503 = vcmp.lt.s32.totalorder %v35, 0
    %v504 = vand.u32 %v35, 2139095040
    %v505 = vshrl.u32 %v504, 23
    %v506 = vsub.s32 %v505, 127
    %v507 = vand.u32 2147483647, %v35
    %v508 = vand.u32 %v507, 8388607
    %v509 = vor.u32 %v508, 8388608
    %v510 = vsub.s32 0, %v509
    %v511 = vadd.s32 %v506, 1
    %vm512 = vcmp.gt.s32.totalorder %v511, 0
    %v513 = vsel %vm512, %v511, 0
    %v514 = vshrl.u32 %v513, 5
    %v515 = vand.u32 %v513, 31
    %v516 = vsub.s32 32, %v515
    %v517 = vshrl.u32 683565275, %v516
    %v518 = vshll.u32 683565275, %v515
    %v519 = vshrl.u32 2475754826, %v516
    %v520 = vor.u32 %v518, %v519
    %v521 = vshll.u32 2475754826, %v515
    %v522 = vshrl.u32 2131351028, %v516
    %v523 = vor.u32 %v521, %v522
    %v524 = vshll.u32 2131351028, %v515
    %v525 = vshrl.u32 2102212464, %v516
    %v526 = vor.u32 %v524, %v525
    %v527 = vshll.u32 2102212464, %v515
    %v528 = vshrl.u32 920167782, %v516
    %v529 = vor.u32 %v527, %v528
    %v530 = vshll.u32 920167782, %v515
    %v531 = vshrl.u32 1326507024, %v516
    %v532 = vor.u32 %v530, %v531
    %vm533 = vcmp.lt.s32.totalorder %v514, 1
    %vm534 = vcmp.lt.s32.totalorder %v514, 2
    %vm535 = vcmp.lt.s32.totalorder %v514, 3
    %vm536 = vcmp.lt.s32.totalorder %v514, 4
    %v537 = vsel %vm533, %v517, %v520
    %v538 = vsel %vm536, %v526, 2102212464
    %v539 = vsel %vm535, %v523, %v538
    %v540 = vsel %vm534, %v537, %v539
    %v541 = vsel %vm533, %v520, %v523
    %v542 = vsel %vm536, %v529, 920167782
    %v543 = vsel %vm535, %v526, %v542
    %v544 = vsel %vm534, %v541, %v543
    %v545 = vsel %vm533, %v523, %v526
    %v546 = vsel %vm536, %v532, 1326507024
    %v547 = vsel %vm535, %v529, %v546
    %v548 = vsel %vm534, %v545, %v547
    %v549 = vshll.u32 %v509, 8
    %v550 = vand.u32 %v549, 65535
    %v551 = vshrl.u32 %v549, 16
    %v552 = vand.u32 %v548, 65535
    %v553 = vshrl.u32 %v548, 16
    %v554 = vmul.u32 %v550, %v552
    %v555 = vmul.u32 %v550, %v553
    %v556 = vmul.u32 %v551, %v552
    %v557 = vmul.u32 %v551, %v553
    %v558 = vshll.u32 %v555, 16
    %v559 = vshrl.u32 %v555, 16
    %v560 = vshll.u32 %v556, 16
    %v561 = vshrl.u32 %v556, 16
    %vm562 = vc.u32 %v554, %v558
    %v563 = vsel %vm562, 1, 0
    %v564 = vadd.s32 %v554, %v558
    %v565 = vadd.s32 %v557, %v563
    %vm566 = vc.u32 %v564, %v560
    %v567 = vsel %vm566, 1, 0
    %v568 = vadd.s32 %v564, %v560
    %v569 = vadd.s32 %v565, %v567
    %v570 = vadd.s32 %v569, %v559
    %v571 = vadd.s32 %v570, %v561
    %v572 = vand.u32 %v549, 65535
    %v573 = vshrl.u32 %v549, 16
    %v574 = vand.u32 %v544, 65535
    %v575 = vshrl.u32 %v544, 16
    %v576 = vmul.u32 %v572, %v574
    %v577 = vmul.u32 %v572, %v575
    %v578 = vmul.u32 %v573, %v574
    %v579 = vmul.u32 %v573, %v575
    %v580 = vshll.u32 %v577, 16
    %v581 = vshrl.u32 %v577, 16
    %v582 = vshll.u32 %v578, 16
    %v583 = vshrl.u32 %v578, 16
    %vm584 = vc.u32 %v576, %v580
    %v585 = vsel %vm584, 1, 0
    %v586 = vadd.s32 %v576, %v580
    %v587 = vadd.s32 %v579, %v585
    %vm588 = vc.u32 %v586, %v582
    %v589 = vsel %vm588, 1, 0
    %v590 = vadd.s32 %v586, %v582
    %v591 = vadd.s32 %v587, %v589
    %v592 = vadd.s32 %v591, %v581
    %v593 = vadd.s32 %v592, %v583
    %v594 = vmul.u32 %v549, %v540
    %v595 = vadd.s32 %v571, %v590
    %vm596 = vc.u32 %v571, %v590
    %v597 = vadd.s32 %v593, 1
    %v598 = vsel %vm596, %v597, %v593
    %v599 = vadd.s32 %v594, %v598
    %v600 = vadd.s32 %v599, 536870912
    %v601 = vshrl.u32 %v600, 30
    %v602 = vshll.u32 %v601, 30
    %v603 = vsub.s32 %v599, %v602
    %vm604 = vcmp.lt.s32.totalorder %v603, 0
    %v605 = vsub.s32 0, %v603
    %v606 = vsel %vm604, %v605, %v603
    %v607 = vclz %v606
    %v608 = vsub.s32 %v607, 2
    %vm609 = vcmp.gt.s32.totalorder 0, %v608
    %v610 = vsel %vm609, 0, %v608
    %v611 = vsub.s32 32, %v610
    %v612 = vshll.u32 %v603, %v610
    %v613 = vshrl.u32 %v595, %v611
    %v614 = vor.u32 %v612, %v613
    %v615 = vsub.s32 4294967266, %v610
    %v616 = vadd.s32 %v615, 127
    %v617 = vshll.u32 %v616, 23
    %v618 = vor.u32 4788187, %v617
    %v619 = vand.u32 2147483647, %v618
    %v621 = vcvt.s32.f32 %v614
    %v622 = vmul.f32 %v621, %v619
    %v623 = vxor.u32 %v622, 2147483648
    %v624 = vsel %vm503, %v623, %v622
    %v625 = vsub.s32 4, %v601
    %v626 = vsel %vm503, %v625, %v601
    %v627 = vsel %vm502, %v35, %v624
    %v628 = vsel %vm502, 0, %v626
    %v629 = vmul.f32 %v627, %v627
    %v630 = vmul.f32 %v629, -0.001358992
    %v631 = vadd.f32 %v630, 0.041655596
    %v632 = vmul.f32 %v629, %v631
    %v633 = vadd.f32 %v632, -0.4999988
    %v634 = vmul.f32 %v629, %v633
    %v635 = vadd.f32 1.0, %v634
    %v636 = vmul.f32 %v627, %v627
    %v637 = vmul.f32 %v636, -0.00019511016
    %v638 = vadd.f32 %v637, 0.008332121
    %v639 = vmul.f32 %v636, %v638
    %v640 = vadd.f32 %v639, -0.16666654
    %v641 = vmul.f32 %v636, %v640
    %v642 = vadd.f32 %v641, 1.0
    %v643 = vmul.f32 %v642, %v627
    %vm644 = vweird.f32 %v35
    %v645 = vand.u32 %v628, 3
    %vm646 = vcmp.lt.s32.totalorder %v645, 2
    %vm647 = vcmp.eq.s32.totalorder %v645, 0
    %v648 = vxor.u32 %v643, 2147483648
    %v649 = vsel %vm647, %v635, %v648
    %vm650 = vcmp.eq.s32.totalorder %v645, 2
    %v651 = vxor.u32 %v635, 2147483648
    %v652 = vsel %vm650, %v651, %v643
    %v653 = vsel %vm646, %v649, %v652
    %v654 = vsel %vm644, nan, %v653
    %v655 = vsel %vm36, %v191, %v500
    %v656 = vsel %vm36, %v346, %v654
    %657 = vst [vmem:[#allocation5] sm:$0xff] %v655
    %658 = vst [vmem:[#allocation5 + $0x8] sm:$0xff] %v656
    // Predicated region
    $region10: #{tpu_custom_call.1} parent=1 // pred_check
      _
    $region11: #{tpu_custom_call.1} parent=1 // pred_check_branch
      %660 = sbr.rel (0) target = $region13
    $region12: #{tpu_custom_call.1} parent=1 // pred_region
      %662 = vsyncadd [#allocation4], 0
      %s663 = sshll.u32 [#allocation5], 4
      %s664 = int_to_ptr.vmem [resolvable:$true] %s663
      %s665 = sshll.u32 %s1, 4
      %s666 = int_to_ptr.hbm [resolvable:$true] %s665
      %671 = dma.vmem_to_hbm [thread:$0]  %s664, 256, %s666, [#allocation4], 128, 128, 8
    $region13: #{tpu_custom_call.1} parent=1 // pred_fallthru
      _
    // Predicated region
    $region14: #{tpu_custom_call.1} parent=1 // pred_check
      _
    $region15: #{tpu_custom_call.1} parent=1 // pred_check_branch
      %673 = sbr.rel (0) target = $region17
    $region16: #{tpu_custom_call.1} parent=1 // pred_region
      %675 = dma.done [#allocation4], 256
    $region17: #{tpu_custom_call.1} parent=1 // pred_fallthru
      _
    %676 = vsyncpa [#allocation3], 1
    %677 = vsyncpa [#allocation4], 1

</llo_original>
